<compile_context>
chip_gen: v7x
topology: tpu7x:2x2x1
jax: 0.10.0
libtpu: 0.0.40
codegen_flags: <defaults>
</compile_context>

<pallas_src>
import math

import jax
import jax.numpy as jnp
from jax.experimental import pallas as pl
from jax.experimental.pallas import tpu as pltpu

_LANE = 1024           # lane-dense last dim (multiple of 128)
_MAX_BLOCK_ROWS = 512  # 512*1024*4B = 2 MiB per block per stream


def _preprocess_kernel(x_ref, noise_ref, y_ref):
    # y = ((x*255 + noise) / 256) * 2 - 1  ==  x*(255/128) + noise*(1/128) - 1
    x = x_ref[...]
    noise = noise_ref[...]
    y_ref[...] = x * (255.0 / 128.0) + noise * (1.0 / 128.0) - 1.0


def _round_up(a, m):
    return (a + m - 1) // m * m


def encoder_preprocess(batch_nchw, noise_nchw):
    """batch_nchw: (B, C, H, W) float32 in [0, 1]; noise_nchw: same shape, U[0,1).

    Returns (y_nchw, ldj) matching Encoder.preprocess with dequantize=True.
    """
    B, C, H, W = batch_nchw.shape
    D = C * H * W
    N = B * D

    # Lane/sublane-dense 2D layout: (rows_padded, 1024), rows padded so the
    # block shape (tr, 1024) is (8,128)-aligned and divides the padded rows.
    rows = pl.cdiv(N, _LANE)
    tr = min(_MAX_BLOCK_ROWS, _round_up(rows, 8))
    rows_padded = _round_up(rows, tr)
    padded = rows_padded * _LANE

    x_flat = batch_nchw.reshape(-1)
    n_flat = noise_nchw.reshape(-1)
    if padded != N:
        x_flat = jnp.pad(x_flat, (0, padded - N))
        n_flat = jnp.pad(n_flat, (0, padded - N))
    x2d = x_flat.reshape(rows_padded, _LANE)
    n2d = n_flat.reshape(rows_padded, _LANE)

    y2d = pl.pallas_call(
        _preprocess_kernel,
        out_shape=jax.ShapeDtypeStruct((rows_padded, _LANE), jnp.float32),
        grid=(rows_padded // tr,),
        in_specs=[
            pl.BlockSpec((tr, _LANE), lambda i: (i, 0)),
            pl.BlockSpec((tr, _LANE), lambda i: (i, 0)),
        ],
        out_specs=pl.BlockSpec((tr, _LANE), lambda i: (i, 0)),
        compiler_params=pltpu.CompilerParams(
            dimension_semantics=("parallel",),
        ),
    )(x2d, n2d)

    y = y2d.reshape(-1)[:N].reshape(B, C, H, W)

    # log-det of y = 2*x - 1 summed over non-batch dims: D * log(2) per element.
    ldj = jnp.full((B,), D * math.log(2.0), dtype=jnp.float32)
    return y, ldj


if __name__ == "__main__":
    key = jax.random.PRNGKey(0)
    kx, kn = jax.random.split(key)

    B, C, H, W = 2, 4, 16, 16
    x = jax.random.uniform(kx, (B, C, H, W), dtype=jnp.float32)      # in [0,1]
    noise = jax.random.uniform(kn, (B, C, H, W), dtype=jnp.float32)  # rand_like

    y, ldj = encoder_preprocess(x, noise)
    y = jax.block_until_ready(y)
    ldj = jax.block_until_ready(ldj)

    # Reference check (pure JAX, same math as the PyTorch module)
    deq_ref = (x * 255.0 + noise) / 256.0
    y_ref = deq_ref * 2.0 - 1.0
    ldj_ref = jnp.full((B,), C * H * W * math.log(2.0), dtype=jnp.float32)

    assert jnp.allclose(y, y_ref, atol=1e-5), "output mismatch"
    assert jnp.allclose(ldj, ldj_ref, atol=1e-3), "ldj mismatch"

    print("KERNEL_OK")
</pallas_src>

<mosaic_0001>
module attributes {stable_mosaic.version = 11 : i64} {
  func.func @_preprocess_kernel(%arg0: i32, %arg1: memref<8x1024xf32, #tpu.memory_space<vmem>>, %arg2: memref<8x1024xf32, #tpu.memory_space<vmem>>, %arg3: memref<8x1024xf32, #tpu.memory_space<vmem>>) attributes {dimension_semantics = [#tpu.dimension_semantics<parallel>], iteration_bounds = array<i64: 1>, scalar_prefetch = 0 : i64, scratch_operands = 0 : i64, tpu.core_type = #tpu.core_type<tc>, window_params = [{transform_indices = @transform_0, window_bounds = array<i64: 8, 1024>}, {transform_indices = @transform_1, window_bounds = array<i64: 8, 1024>}, {transform_indices = @transform_2, window_bounds = array<i64: 8, 1024>}]} {
    %c0 = arith.constant 0 : index
    %c0_0 = arith.constant 0 : index
    %0 = vector.load %arg1[%c0, %c0_0] : memref<8x1024xf32, #tpu.memory_space<vmem>>, vector<8x1024xf32>
    %c0_1 = arith.constant 0 : index
    %c0_2 = arith.constant 0 : index
    %1 = vector.load %arg2[%c0_1, %c0_2] : memref<8x1024xf32, #tpu.memory_space<vmem>>, vector<8x1024xf32>
    %cst = arith.constant 1.9921875 : f32
    %2 = vector.broadcast %cst : f32 to vector<8x1024xf32>
    %3 = arith.mulf %0, %2 : vector<8x1024xf32>
    %cst_3 = arith.constant 7.812500e-03 : f32
    %4 = vector.broadcast %cst_3 : f32 to vector<8x1024xf32>
    %5 = arith.mulf %1, %4 : vector<8x1024xf32>
    %6 = arith.addf %3, %5 : vector<8x1024xf32>
    %cst_4 = arith.constant 1.000000e+00 : f32
    %7 = vector.broadcast %cst_4 : f32 to vector<8x1024xf32>
    %8 = arith.subf %6, %7 : vector<8x1024xf32>
    %c0_5 = arith.constant 0 : index
    %c0_6 = arith.constant 0 : index
    %9 = vector.load %arg3[%c0_5, %c0_6] : memref<8x1024xf32, #tpu.memory_space<vmem>>, vector<8x1024xf32>
    tpu.vector_store %arg3[%c0_5, %c0_6], %8 {strides = array<i32>} : memref<8x1024xf32, #tpu.memory_space<vmem>>, vector<8x1024xf32>,
    return
  }
  func.func @transform_0(%arg0: i32) -> (i32, i32) {
    %c0_i32 = arith.constant 0 : i32
    %c0_i32_0 = arith.constant 0 : i32
    return %arg0, %c0_i32 : i32, i32
  }
  func.func @transform_1(%arg0: i32) -> (i32, i32) {
    %c0_i32 = arith.constant 0 : i32
    %c0_i32_0 = arith.constant 0 : i32
    return %arg0, %c0_i32 : i32, i32
  }
  func.func @transform_2(%arg0: i32) -> (i32, i32) {
    %c0_i32 = arith.constant 0 : i32
    %c0_i32_0 = arith.constant 0 : i32
    return %arg0, %c0_i32 : i32, i32
  }
}

</mosaic_0001>

<llo_original>
// kernel: tpu_custom_call.1
$region0: #{tpu_custom_call.1}
  #allocation0 [shape = 'u32[]', space=smem, size = 0x4, offset = 0x4, fixed_abs, tag = 'smem constant byte address 0x4 - core index']
  #allocation1 [shape = 'u32[144,128]{1,0:T(1,128)}', space=vmem, size = 0x12000, scoped, tag = 'internal scratch']
  %s0 = inlined_call_operand.hbm [shape: f32[8,1024], index: 0, kind: input, shape index: {}]
  %s1 = inlined_call_operand.hbm [shape: f32[8,1024], index: 1, kind: input, shape index: {}]
  %s2 = inlined_call_operand.hbm [shape: f32[8,1024], index: 2, kind: output, shape index: {}]
  %s3 = sld [smem:[#allocation0]]
  $region26: #{tpu_custom_call.1} parent=0
    _
  %s5 = ssub.s32 1, %s3
  %s6 = scalar_select 0, %s5, %s3
  $region1: #{tpu_custom_call.1} parent=0
    #allocation2 [shape = 'u8[32768]{0}', space=vmem, size = 0x8000, scoped, tag = 'input window, operand 0, single buffered']
    #allocation3 [shape = 's32[1]{0}', space=sflag, size = 0x4, scoped, tag = 'scoped memory for tpu_custom_call.1']
    #allocation4 [shape = 's32[1]{0}', space=sflag, size = 0x4, scoped, tag = 'scoped memory for tpu_custom_call.1']
    #allocation5 [shape = 'u8[32768]{0}', space=vmem, size = 0x8000, scoped, tag = 'input window, operand 1, single buffered']
    #allocation6 [shape = 's32[1]{0}', space=sflag, size = 0x4, scoped, tag = 'scoped memory for tpu_custom_call.1']
    #allocation7 [shape = 'u8[32768]{0}', space=vmem, size = 0x8000, scoped, tag = 'output window, operand 0, single buffered']
    %7 = vsyncpa [#allocation3], 0
    %8 = vsyncpa [#allocation6], 0
    %9 = vsyncpa [#allocation4], 0
    // Predicated region
    $region2: #{tpu_custom_call.1} parent=1 // pred_check
      _
    $region3: #{tpu_custom_call.1} parent=1 // pred_check_branch
      %11 = sbr.rel (0) target = $region5
    $region4: #{tpu_custom_call.1} parent=1 // pred_region
      %s13 = ssub.s32 1024, 1024
      %14 = vsyncadd [#allocation3], %s13
      %s16 = sshll.u32 [#allocation2], 4
      %s17 = int_to_ptr.vmem [resolvable:$true] %s16
      %19 = dma.hbm_to_vmem [thread:$0]  %s0, 1024, %s17, [#allocation3]
    $region5: #{tpu_custom_call.1} parent=1 // pred_fallthru
      _
    // Predicated region
    $region6: #{tpu_custom_call.1} parent=1 // pred_check
      _
    $region7: #{tpu_custom_call.1} parent=1 // pred_check_branch
      %21 = sbr.rel (0) target = $region9
    $region8: #{tpu_custom_call.1} parent=1 // pred_region
      %s23 = ssub.s32 1024, 1024
      %24 = vsyncadd [#allocation6], %s23
      %s26 = sshll.u32 [#allocation5], 4
      %s27 = int_to_ptr.vmem [resolvable:$true] %s26
      %29 = dma.hbm_to_vmem [thread:$0]  %s1, 1024, %s27, [#allocation6]
    $region9: #{tpu_custom_call.1} parent=1 // pred_fallthru
      _
    // Predicated region
    $region10: #{tpu_custom_call.1} parent=1 // pred_check
      _
    $region11: #{tpu_custom_call.1} parent=1 // pred_check_branch
      %31 = sbr.rel (0) target = $region13
    $region12: #{tpu_custom_call.1} parent=1 // pred_region
      %32 = dma.done [#allocation3], 1024
    $region13: #{tpu_custom_call.1} parent=1 // pred_fallthru
      _
    // Predicated region
    $region14: #{tpu_custom_call.1} parent=1 // pred_check
      _
    $region15: #{tpu_custom_call.1} parent=1 // pred_check_branch
      %34 = sbr.rel (0) target = $region17
    $region16: #{tpu_custom_call.1} parent=1 // pred_region
      %35 = dma.done [#allocation6], 1024
    $region17: #{tpu_custom_call.1} parent=1 // pred_fallthru
      _
    %v36 = vld [vmem:[#allocation2] sm:$0xff]
    %v37 = vld [vmem:[#allocation2 + $0x8] sm:$0xff]
    %v38 = vld [vmem:[#allocation2 + $0x10] sm:$0xff]
    %v39 = vld [vmem:[#allocation2 + $0x18] sm:$0xff]
    %v40 = vld [vmem:[#allocation2 + $0x20] sm:$0xff]
    %v41 = vld [vmem:[#allocation2 + $0x28] sm:$0xff]
    %v42 = vld [vmem:[#allocation2 + $0x30] sm:$0xff]
    %v43 = vld [vmem:[#allocation2 + $0x38] sm:$0xff]
    %v44 = vld [vmem:[#allocation5] sm:$0xff]
    %v45 = vld [vmem:[#allocation5 + $0x8] sm:$0xff]
    %v46 = vld [vmem:[#allocation5 + $0x10] sm:$0xff]
    %v47 = vld [vmem:[#allocation5 + $0x18] sm:$0xff]
    %v48 = vld [vmem:[#allocation5 + $0x20] sm:$0xff]
    %v49 = vld [vmem:[#allocation5 + $0x28] sm:$0xff]
    %v50 = vld [vmem:[#allocation5 + $0x30] sm:$0xff]
    %v51 = vld [vmem:[#allocation5 + $0x38] sm:$0xff]
    %v52 = vmul.f32 %v36, 1.9921875
    %v53 = vmul.f32 %v37, 1.9921875
    %v54 = vmul.f32 %v38, 1.9921875
    %v55 = vmul.f32 %v39, 1.9921875
    %v56 = vmul.f32 %v40, 1.9921875
    %v57 = vmul.f32 %v41, 1.9921875
    %v58 = vmul.f32 %v42, 1.9921875
    %v59 = vmul.f32 %v43, 1.9921875
    %v60 = vmul.f32 %v44, 0.0078125
    %v61 = vmul.f32 %v45, 0.0078125
    %v62 = vmul.f32 %v46, 0.0078125
    %v63 = vmul.f32 %v47, 0.0078125
    %v64 = vmul.f32 %v48, 0.0078125
    %v65 = vmul.f32 %v49, 0.0078125
    %v66 = vmul.f32 %v50, 0.0078125
    %v67 = vmul.f32 %v51, 0.0078125
    %v68 = vadd.f32 %v52, %v60
    %v69 = vadd.f32 %v53, %v61
    %v70 = vadd.f32 %v54, %v62
    %v71 = vadd.f32 %v55, %v63
    %v72 = vadd.f32 %v56, %v64
    %v73 = vadd.f32 %v57, %v65
    %v74 = vadd.f32 %v58, %v66
    %v75 = vadd.f32 %v59, %v67
    %v76 = vsub.f32 %v68, 1.0
    %v77 = vsub.f32 %v69, 1.0
    %v78 = vsub.f32 %v70, 1.0
    %v79 = vsub.f32 %v71, 1.0
    %v80 = vsub.f32 %v72, 1.0
    %v81 = vsub.f32 %v73, 1.0
    %v82 = vsub.f32 %v74, 1.0
    %v83 = vsub.f32 %v75, 1.0
    %84 = vst [vmem:[#allocation7] sm:$0xff] %v76
    %85 = vst [vmem:[#allocation7 + $0x8] sm:$0xff] %v77
    %86 = vst [vmem:[#allocation7 + $0x10] sm:$0xff] %v78
    %87 = vst [vmem:[#allocation7 + $0x18] sm:$0xff] %v79
    %88 = vst [vmem:[#allocation7 + $0x20] sm:$0xff] %v80
    %89 = vst [vmem:[#allocation7 + $0x28] sm:$0xff] %v81
    %90 = vst [vmem:[#allocation7 + $0x30] sm:$0xff] %v82
    %91 = vst [vmem:[#allocation7 + $0x38] sm:$0xff] %v83
    // Predicated region
    $region18: #{tpu_custom_call.1} parent=1 // pred_check
      _
    $region19: #{tpu_custom_call.1} parent=1 // pred_check_branch
      %93 = sbr.rel (0) target = $region21
    $region20: #{tpu_custom_call.1} parent=1 // pred_region
      %s95 = ssub.s32 1024, 1024
      %96 = vsyncadd [#allocation4], %s95
      %s98 = sshll.u32 [#allocation7], 4
      %s99 = int_to_ptr.vmem [resolvable:$true] %s98
      %101 = dma.vmem_to_hbm [thread:$0]  %s99, 1024, %s2, [#allocation4]
    $region21: #{tpu_custom_call.1} parent=1 // pred_fallthru
      _
    // Predicated region
    $region22: #{tpu_custom_call.1} parent=1 // pred_check
      _
    $region23: #{tpu_custom_call.1} parent=1 // pred_check_branch
      %103 = sbr.rel (0) target = $region25
    $region24: #{tpu_custom_call.1} parent=1 // pred_region
      %104 = dma.done [#allocation4], 1024
    $region25: #{tpu_custom_call.1} parent=1 // pred_fallthru
      _
    %105 = vsyncpa [#allocation3], 1
    %106 = vsyncpa [#allocation6], 1
    %107 = vsyncpa [#allocation4], 1

</llo_original>
